<compile_context>
chip_gen: v5e
topology: v5e:2x2
jax: 0.10.0
libtpu: 0.0.40
codegen_flags: <defaults>
</compile_context>

<pallas_src>
import functools

import jax
import jax.numpy as jnp
from jax.experimental import pallas as pl
from jax.experimental.pallas import tpu as pltpu


def _cmse_kernel(pred_ref, target_ref, mask_ref, loss_ref, msum_ref,
                 *, f_total, f_tile):
    # Grid: (batch blocks [parallel], flat/spatial blocks [arbitrary, last]).
    j = pl.program_id(1)

    # Per-sample accumulators live in the resident output block; zero them on
    # the first spatial tile of each batch block.
    @pl.when(j == 0)
    def _():
        loss_ref[...] = jnp.zeros_like(loss_ref)
        msum_ref[...] = jnp.zeros_like(msum_ref)

    p = jax.nn.sigmoid(pred_ref[...].astype(jnp.float32))
    t = target_ref[...].astype(jnp.float32)
    m = mask_ref[...].astype(jnp.float32)

    d = p - t
    sq = d * d * m

    # In-kernel tail-column masking: boundary blocks along F contain
    # unspecified data, so select (not multiply) it away.  Only emitted when
    # F is not a multiple of F_TILE (static Python check).
    if f_total % f_tile != 0:
        blk_b, blk_f = pred_ref.shape
        col = jax.lax.broadcasted_iota(jnp.int32, (blk_b, blk_f), 1)
        valid = (j * f_tile + col) < f_total
        sq = jnp.where(valid, sq, 0.0)
        m = jnp.where(valid, m, 0.0)

    loss_ref[...] += jnp.sum(sq, axis=1, keepdims=True)
    msum_ref[...] += jnp.sum(m, axis=1, keepdims=True)


def _pick_tiles(N, F):
    """Pick (B_TILE, F_TILE) ~ 4 MiB/input f32 blocks, respecting tiling rules."""
    MAX_F_TILE = 32768            # lanes per block (multiple of 128)
    TARGET_ELEMS = 1 << 20        # ~4 MiB of f32 per input block

    if F <= 128:
        F_TILE = F                             # block dim == full array dim
    else:
        F_TILE = min(MAX_F_TILE, (F // 128) * 128)   # multiple of 128, <= F

    if N <= 8:
        B_TILE = N                             # block dim == full array dim
    else:
        rows = max(8, ((TARGET_ELEMS // F_TILE) // 8) * 8)
        B_TILE = min(rows, (N // 8) * 8)       # multiple of 8, <= N
        # Prefer >= 2 blocks along the parallel batch axis (v7x megacore).
        if pl.cdiv(N, B_TILE) < 2:
            half = ((pl.cdiv(N, 2) + 7) // 8) * 8
            if half < B_TILE:
                B_TILE = half
    return B_TILE, F_TILE


def cmse_loss(pred, target, mask, essential, *, if_essential: bool = True):
    """pred/target/mask: (N, C, H, W); essential: (N,). Returns scalar f32 loss.

    mask may be float/int8/bool; pred/target may be bf16 (kernel upcasts to f32).
    """
    N, C, H, W = pred.shape
    F = C * H * W

    # Contiguous reshape: free (no pad, no extra HBM pass).
    pred2 = pred.reshape(N, F)
    target2 = target.reshape(N, F)
    mask2 = mask.reshape(N, F)

    B_TILE, F_TILE = _pick_tiles(N, F)
    grid = (pl.cdiv(N, B_TILE), pl.cdiv(F, F_TILE))

    in_spec = pl.BlockSpec((B_TILE, F_TILE), lambda i, j: (i, j))
    out_spec = pl.BlockSpec((B_TILE, 1), lambda i, j: (i, 0))

    bytes_in = (pred2.size * pred2.dtype.itemsize
                + target2.size * target2.dtype.itemsize
                + mask2.size * mask2.dtype.itemsize)
    cost = pl.CostEstimate(flops=7 * N * F,
                           transcendentals=N * F,
                           bytes_accessed=bytes_in + 2 * N * 4)

    kernel = functools.partial(_cmse_kernel, f_total=F, f_tile=F_TILE)

    loss_sums, mask_sums = pl.pallas_call(
        kernel,
        out_shape=(jax.ShapeDtypeStruct((N, 1), jnp.float32),
                   jax.ShapeDtypeStruct((N, 1), jnp.float32)),
        grid_spec=pltpu.PrefetchScalarGridSpec(
            num_scalar_prefetch=0,
            grid=grid,
            in_specs=[in_spec, in_spec, in_spec],
            out_specs=(out_spec, out_spec),
        ),
        compiler_params=pltpu.CompilerParams(
            dimension_semantics=("parallel", "arbitrary"),
            vmem_limit_bytes=32 << 20),
        cost_estimate=cost,
    )(pred2, target2, mask2)

    per_sample = loss_sums[:, 0] / (mask_sums[:, 0] + 1e-6)
    if if_essential:
        per_sample = per_sample * essential.astype(jnp.float32)
    return jnp.mean(per_sample)


def _reference(pred, target, mask, essential, if_essential=True):
    p = jax.nn.sigmoid(pred.astype(jnp.float32))
    loss = (p - target.astype(jnp.float32)) ** 2
    m = mask.astype(jnp.float32)
    loss = jnp.sum(loss * m, axis=(1, 2, 3)) / (jnp.sum(m, axis=(1, 2, 3)) + 1e-6)
    if if_essential:
        loss = loss * essential.astype(jnp.float32)
    return jnp.mean(loss)


if __name__ == "__main__":
    key = jax.random.PRNGKey(0)
    k1, k2, k3, k4 = jax.random.split(key, 4)

    N, C, H, W = 2, 4, 16, 16
    pred = jax.random.normal(k1, (N, C, H, W), dtype=jnp.float32)
    target = jax.random.uniform(k2, (N, C, H, W), dtype=jnp.float32)
    mask = (jax.random.uniform(k3, (N, C, H, W)) > 0.5).astype(jnp.float32)
    essential = jax.random.uniform(k4, (N,), dtype=jnp.float32)

    loss = cmse_loss(pred, target, mask, essential, if_essential=True)
    loss = jax.block_until_ready(loss)

    ref = _reference(pred, target, mask, essential, if_essential=True)
    assert jnp.allclose(loss, ref, rtol=1e-5, atol=1e-6), (loss, ref)

    # Also check the if_essential=False path.
    loss_ne = jax.block_until_ready(
        cmse_loss(pred, target, mask, essential, if_essential=False))
    ref_ne = _reference(pred, target, mask, essential, if_essential=False)
    assert jnp.allclose(loss_ne, ref_ne, rtol=1e-5, atol=1e-6), (loss_ne, ref_ne)

    print("KERNEL_OK")
</pallas_src>

<mosaic_0001>
module attributes {stable_mosaic.version = 11 : i64} {
  func.func @_cmse_kernel(%arg0: i32, %arg1: i32, %arg2: memref<2x1024xf32, #tpu.memory_space<vmem>>, %arg3: memref<2x1024xf32, #tpu.memory_space<vmem>>, %arg4: memref<2x1024xf32, #tpu.memory_space<vmem>>, %arg5: memref<2x1xf32, #tpu.memory_space<vmem>>, %arg6: memref<2x1xf32, #tpu.memory_space<vmem>>) attributes {dimension_semantics = [#tpu.dimension_semantics<parallel>, #tpu.dimension_semantics<arbitrary>], iteration_bounds = array<i64: 1, 1>, scalar_prefetch = 0 : i64, scratch_operands = 0 : i64, tpu.core_type = #tpu.core_type<tc>, window_params = [{transform_indices = @transform_0, window_bounds = array<i64: 2, 1024>}, {transform_indices = @transform_1, window_bounds = array<i64: 2, 1024>}, {transform_indices = @transform_2, window_bounds = array<i64: 2, 1024>}, {transform_indices = @transform_3, window_bounds = array<i64: 2, 1>}, {transform_indices = @transform_4, window_bounds = array<i64: 2, 1>}]} {
    %c0_i32 = arith.constant 0 : i32
    %0 = arith.cmpi eq, %arg1, %c0_i32 : i32
    %1 = arith.extui %0 : i1 to i32
    %c0_i32_0 = arith.constant 0 : i32
    %2 = arith.cmpi ne, %1, %c0_i32_0 : i32
    scf.if %2 {
      %cst_16 = arith.constant 0.000000e+00 : f32
      %24 = vector.broadcast %cst_16 : f32 to vector<2x1xf32>
      %c0_17 = arith.constant 0 : index
      %c0_18 = arith.constant 0 : index
      %25 = vector.load %arg5[%c0_17, %c0_18] : memref<2x1xf32, #tpu.memory_space<vmem>>, vector<2x1xf32>
      tpu.vector_store %arg5[%c0_17, %c0_18], %24 {strides = array<i32>} : memref<2x1xf32, #tpu.memory_space<vmem>>, vector<2x1xf32>,
      %cst_19 = arith.constant 0.000000e+00 : f32
      %26 = vector.broadcast %cst_19 : f32 to vector<2x1xf32>
      %c0_20 = arith.constant 0 : index
      %c0_21 = arith.constant 0 : index
      %27 = vector.load %arg6[%c0_20, %c0_21] : memref<2x1xf32, #tpu.memory_space<vmem>>, vector<2x1xf32>
      tpu.vector_store %arg6[%c0_20, %c0_21], %26 {strides = array<i32>} : memref<2x1xf32, #tpu.memory_space<vmem>>, vector<2x1xf32>,
    } else {
    }
    %c0 = arith.constant 0 : index
    %c0_1 = arith.constant 0 : index
    %3 = vector.load %arg2[%c0, %c0_1] : memref<2x1024xf32, #tpu.memory_space<vmem>>, vector<2x1024xf32>
    %4 = arith.negf %3 : vector<2x1024xf32>
    %5 = math.exp %4 : vector<2x1024xf32>
    %cst = arith.constant 1.000000e+00 : f32
    %6 = vector.broadcast %cst : f32 to vector<2x1024xf32>
    %7 = arith.addf %6, %5 : vector<2x1024xf32>
    %8 = arith.divf %6, %7 : vector<2x1024xf32>
    %c0_2 = arith.constant 0 : index
    %c0_3 = arith.constant 0 : index
    %9 = vector.load %arg3[%c0_2, %c0_3] : memref<2x1024xf32, #tpu.memory_space<vmem>>, vector<2x1024xf32>
    %c0_4 = arith.constant 0 : index
    %c0_5 = arith.constant 0 : index
    %10 = vector.load %arg4[%c0_4, %c0_5] : memref<2x1024xf32, #tpu.memory_space<vmem>>, vector<2x1024xf32>
    %11 = arith.subf %8, %9 : vector<2x1024xf32>
    %12 = arith.mulf %11, %11 : vector<2x1024xf32>
    %13 = arith.mulf %12, %10 : vector<2x1024xf32>
    %c0_6 = arith.constant 0 : index
    %c0_7 = arith.constant 0 : index
    %14 = vector.load %arg5[%c0_6, %c0_7] : memref<2x1xf32, #tpu.memory_space<vmem>>, vector<2x1xf32>
    %cst_8 = arith.constant dense<0.000000e+00> : vector<2xf32>
    %15 = vector.multi_reduction <add>, %13, %cst_8 [1] : vector<2x1024xf32> to vector<2xf32>
    %16 = vector.shape_cast %15 : vector<2xf32> to vector<2x1xf32>
    %17 = arith.addf %14, %16 : vector<2x1xf32>
    %c0_9 = arith.constant 0 : index
    %c0_10 = arith.constant 0 : index
    %18 = vector.load %arg5[%c0_9, %c0_10] : memref<2x1xf32, #tpu.memory_space<vmem>>, vector<2x1xf32>
    tpu.vector_store %arg5[%c0_9, %c0_10], %17 {strides = array<i32>} : memref<2x1xf32, #tpu.memory_space<vmem>>, vector<2x1xf32>,
    %c0_11 = arith.constant 0 : index
    %c0_12 = arith.constant 0 : index
    %19 = vector.load %arg6[%c0_11, %c0_12] : memref<2x1xf32, #tpu.memory_space<vmem>>, vector<2x1xf32>
    %cst_13 = arith.constant dense<0.000000e+00> : vector<2xf32>
    %20 = vector.multi_reduction <add>, %10, %cst_13 [1] : vector<2x1024xf32> to vector<2xf32>
    %21 = vector.shape_cast %20 : vector<2xf32> to vector<2x1xf32>
    %22 = arith.addf %19, %21 : vector<2x1xf32>
    %c0_14 = arith.constant 0 : index
    %c0_15 = arith.constant 0 : index
    %23 = vector.load %arg6[%c0_14, %c0_15] : memref<2x1xf32, #tpu.memory_space<vmem>>, vector<2x1xf32>
    tpu.vector_store %arg6[%c0_14, %c0_15], %22 {strides = array<i32>} : memref<2x1xf32, #tpu.memory_space<vmem>>, vector<2x1xf32>,
    return
  }
  func.func @transform_0(%arg0: i32, %arg1: i32) -> (i32, i32) {
    %c0_i32 = arith.constant 0 : i32
    return %arg0, %arg1 : i32, i32
  }
  func.func @transform_1(%arg0: i32, %arg1: i32) -> (i32, i32) {
    %c0_i32 = arith.constant 0 : i32
    return %arg0, %arg1 : i32, i32
  }
  func.func @transform_2(%arg0: i32, %arg1: i32) -> (i32, i32) {
    %c0_i32 = arith.constant 0 : i32
    return %arg0, %arg1 : i32, i32
  }
  func.func @transform_3(%arg0: i32, %arg1: i32) -> (i32, i32) {
    %c0_i32 = arith.constant 0 : i32
    %c0_i32_0 = arith.constant 0 : i32
    return %arg0, %c0_i32 : i32, i32
  }
  func.func @transform_4(%arg0: i32, %arg1: i32) -> (i32, i32) {
    %c0_i32 = arith.constant 0 : i32
    %c0_i32_0 = arith.constant 0 : i32
    return %arg0, %c0_i32 : i32, i32
  }
}

</mosaic_0001>

<llo_original>
// kernel: tpu_custom_call.1
$region0: #{tpu_custom_call.1}
  #allocation0 [shape = 'u32[]', space=smem, size = 0x4, offset = 0x4, fixed_abs, tag = 'smem constant byte address 0x4 - core index']
  #allocation1 [shape = 'u32[72,128]{1,0:T(1,128)}', space=vmem, size = 0x9000, scoped, tag = 'internal scratch']
  %s0 = inlined_call_operand.hbm [shape: f32[2,1024], index: 0, kind: input, shape index: {}]
  %s1 = inlined_call_operand.hbm [shape: f32[2,1024], index: 1, kind: input, shape index: {}]
  %s2 = inlined_call_operand.hbm [shape: f32[2,1024], index: 2, kind: input, shape index: {}]
  %s3 = inlined_call_operand.vmem [shape: f32[2,1], index: 3, kind: output, shape index: {0}]
  %s4 = inlined_call_operand.vmem [shape: f32[2,1], index: 4, kind: output, shape index: {1}]
  %5 = xla_tuple %s3, %s4
  %s6 = sld [smem:[#allocation0]]
  $region46: #{tpu_custom_call.1} parent=0
    _
  %s8 = ssub.s32 1, %s6
  %s9 = scalar_select 0, %s8, %s6
  $region1: #{tpu_custom_call.1} parent=0
    #allocation2 [shape = 'u8[8192]{0}', space=vmem, size = 0x2000, scoped, tag = 'input window, operand 0, single buffered']
    #allocation3 [shape = 's32[1]{0}', space=sflag, size = 0x4, scoped, tag = 'scoped memory for tpu_custom_call.1']
    #allocation4 [shape = 'u8[8192]{0}', space=vmem, size = 0x2000, scoped, tag = 'input window, operand 1, single buffered']
    #allocation5 [shape = 's32[1]{0}', space=sflag, size = 0x4, scoped, tag = 'scoped memory for tpu_custom_call.1']
    #allocation6 [shape = 'u8[8192]{0}', space=vmem, size = 0x2000, scoped, tag = 'input window, operand 2, single buffered']
    %10 = vsyncpa [#allocation3], 0
    %11 = vsyncpa [#allocation5], 0
    // Predicated region
    $region2: #{tpu_custom_call.1} parent=1 // pred_check
      _
    $region3: #{tpu_custom_call.1} parent=1 // pred_check_branch
      %13 = sbr.rel (0) target = $region5
    $region4: #{tpu_custom_call.1} parent=1 // pred_region
      %15 = vsyncadd [#allocation3], 0
      %s17 = sshll.u32 %s0, 4
      %s18 = int_to_ptr.hbm [resolvable:$true] %s17
      %s19 = sshll.u32 [#allocation2], 4
      %s20 = int_to_ptr.vmem [resolvable:$true] %s19
      %22 = dma.hbm_to_vmem [thread:$0]  %s18, 256, %s20, [#allocation3]
    $region5: #{tpu_custom_call.1} parent=1 // pred_fallthru
      _
    // Predicated region
    $region6: #{tpu_custom_call.1} parent=1 // pred_check
      _
    $region7: #{tpu_custom_call.1} parent=1 // pred_check_branch
      %24 = sbr.rel (0) target = $region9
    $region8: #{tpu_custom_call.1} parent=1 // pred_region
      %26 = vsyncadd [#allocation5], 0
      %s28 = sshll.u32 %s1, 4
      %s29 = int_to_ptr.hbm [resolvable:$true] %s28
      %s30 = sshll.u32 [#allocation4], 4
      %s31 = int_to_ptr.vmem [resolvable:$true] %s30
      %33 = dma.hbm_to_vmem [thread:$0]  %s29, 256, %s31, [#allocation5]
    $region9: #{tpu_custom_call.1} parent=1 // pred_fallthru
      _
    // Predicated region
    $region10: #{tpu_custom_call.1} parent=1 // pred_check
      _
    $region11: #{tpu_custom_call.1} parent=1 // pred_check_branch
      %35 = sbr.rel (0) target = $region13
    $region12: #{tpu_custom_call.1} parent=1 // pred_region
      %37 = vsyncadd [#allocation5], 0
      %s39 = sshll.u32 %s2, 4
      %s40 = int_to_ptr.hbm [resolvable:$true] %s39
      %s41 = sshll.u32 [#allocation6], 4
      %s42 = int_to_ptr.vmem [resolvable:$true] %s41
      %44 = dma.hbm_to_vmem [thread:$0]  %s40, 256, %s42, [#allocation5]
    $region13: #{tpu_custom_call.1} parent=1 // pred_fallthru
      _
    // Predicated region
    $region14: #{tpu_custom_call.1} parent=1 // pred_check
      _
    $region15: #{tpu_custom_call.1} parent=1 // pred_check_branch
      %46 = sbr.rel (0) target = $region17
    $region16: #{tpu_custom_call.1} parent=1 // pred_region
      %48 = dma.done [#allocation3], 256
    $region17: #{tpu_custom_call.1} parent=1 // pred_fallthru
      _
    // Predicated region
    $region18: #{tpu_custom_call.1} parent=1 // pred_check
      _
    $region19: #{tpu_custom_call.1} parent=1 // pred_check_branch
      %50 = sbr.rel (0) target = $region21
    $region20: #{tpu_custom_call.1} parent=1 // pred_region
      %52 = dma.done [#allocation5], 256
    $region21: #{tpu_custom_call.1} parent=1 // pred_fallthru
      _
    // Predicated region
    $region22: #{tpu_custom_call.1} parent=1 // pred_check
      _
    $region23: #{tpu_custom_call.1} parent=1 // pred_check_branch
      %54 = sbr.rel (0) target = $region25
    $region24: #{tpu_custom_call.1} parent=1 // pred_region
      %56 = dma.done [#allocation5], 256
    $region25: #{tpu_custom_call.1} parent=1 // pred_fallthru
      _
    %p57 = scmp.eq.s32.totalorder 0, 0
    // Predicated region
    $region26: #{tpu_custom_call.1} parent=1 // pred_check
      %p58 = pneg %p57
    $region27: #{tpu_custom_call.1} parent=1 // pred_check_branch
      %60 = sbr.rel (%p58) target = $region29
    $region28: #{tpu_custom_call.1} parent=1 // pred_region
      %vm61 = vcmask 1024
      %62 = vst.msk [vmem:[%s3] sm:$0x3] %vm61, 0.0
      %63 = vst.msk [vmem:[%s4] sm:$0x3] %vm61, 0.0
    $region29: #{tpu_custom_call.1} parent=1 // pred_fallthru
      _
    %v64 = vld [vmem:[#allocation2] sm:$0xff]
    %v65 = vld [vmem:[#allocation2 + $0x8] sm:$0xff]
    %v66 = vxor.u32 %v64, 2147483648
    %v67 = vxor.u32 %v65, 2147483648
    %v68 = vmul.f32 %v66, 1.442695
    %v69 = vpow.pop %v68
    %v70 = vmul.f32 %v67, 1.442695
    %v71 = vpow.pop %v70
    %v72 = vadd.f32 %v69, 1.0
    %v73 = vadd.f32 %v71, 1.0
    %v74 = vrcp.pop %v72
    %v75 = vmul.f32 %v72, %v74
    %v76 = vsub.f32 1.0, %v75
    %v77 = vmul.f32 %v74, %v76
    %v78 = vadd.f32 %v74, %v77
    %vm79 = vweird.f32 %v72
    %vm80 = vweird.f32 %v74
    %vm81 = vmor %vm79, %vm80
    %v82 = vsel %vm81, %v74, %v78
    %v83 = vand.u32 2147483647, %v72
    %vm84 = vcmp.eq.f32.partialorder %v83, 8.507059e+37
    %v85 = vand.u32 %v72, 2147483648
    %v86 = vor.u32 1.1754944e-38, %v85
    %v87 = vsel %vm84, %v86, %v82
    %v88 = vmul.f32 1.0, %v87
    %v89 = vrcp.pop %v73
    %v90 = vmul.f32 %v73, %v89
    %v91 = vsub.f32 1.0, %v90
    %v92 = vmul.f32 %v89, %v91
    %v93 = vadd.f32 %v89, %v92
    %vm94 = vweird.f32 %v73
    %vm95 = vweird.f32 %v89
    %vm96 = vmor %vm94, %vm95
    %v97 = vsel %vm96, %v89, %v93
    %v98 = vand.u32 2147483647, %v73
    %vm99 = vcmp.eq.f32.partialorder %v98, 8.507059e+37
    %v100 = vand.u32 %v73, 2147483648
    %v101 = vor.u32 1.1754944e-38, %v100
    %v102 = vsel %vm99, %v101, %v97
    %v103 = vmul.f32 1.0, %v102
    %v104 = vld [vmem:[#allocation4] sm:$0xff]
    %v105 = vld [vmem:[#allocation4 + $0x8] sm:$0xff]
    %v106 = vld [vmem:[#allocation6] sm:$0xff]
    %v107 = vld [vmem:[#allocation6 + $0x8] sm:$0xff]
    %v108 = vsub.f32 %v88, %v104
    %v109 = vsub.f32 %v103, %v105
    %v110 = vmul.f32 %v108, %v108
    %v111 = vmul.f32 %v109, %v109
    %v112 = vmul.f32 %v110, %v106
    %v113 = vmul.f32 %v111, %v107
    %v114 = vld [vmem:[%s3] sm:$0x3]
    %117 = vst [vmem:[#allocation1] ss:$4 sm:$0xff] %v112
    %s118 = scalar_lea.vmem [#allocation1], 32
    %119 = vst [vmem:[%s118] ss:$4 sm:$0xff] %v113
    %v120 = vld.sshfl [vmem:[#allocation1] sm:$0xff pattern:$0x73625140]
    %v121 = vld.sshfl [vmem:[#allocation1 + $0x8] sm:$0xff pattern:$0x73625140]
    %v122 = vld.sshfl [vmem:[#allocation1 + $0x10] sm:$0xff pattern:$0x73625140]
    %v123 = vld.sshfl [vmem:[#allocation1 + $0x18] sm:$0xff pattern:$0x73625140]
    %v124 = vld.sshfl [vmem:[#allocation1 + $0x20] sm:$0xff pattern:$0x73625140]
    %v125 = vld.sshfl [vmem:[#allocation1 + $0x28] sm:$0xff pattern:$0x73625140]
    %v126 = vld.sshfl [vmem:[#allocation1 + $0x30] sm:$0xff pattern:$0x73625140]
    %v127 = vld.sshfl [vmem:[#allocation1 + $0x38] sm:$0xff pattern:$0x73625140]
    %vm136 = vcmask 1041408
    %v137 = vsel %vm136, %v120, 0.0
    %v138 = vsel %vm136, %v121, 0.0
    %v139 = vadd.f32 %v137, %v138
    %v140 = vsel %vm136, %v122, 0.0
    %v141 = vadd.f32 %v139, %v140
    %v142 = vsel %vm136, %v123, 0.0
    %v143 = vadd.f32 %v141, %v142
    %v144 = vsel %vm136, %v124, 0.0
    %v145 = vadd.f32 %v143, %v144
    %v146 = vsel %vm136, %v125, 0.0
    %v147 = vadd.f32 %v145, %v146
    %v148 = vsel %vm136, %v126, 0.0
    %v149 = vadd.f32 %v147, %v148
    %v150 = vsel %vm136, %v127, 0.0
    %v151 = vadd.f32 %v149, %v150
    %152 = vadd.xlane.f32.xlu0 %v151
    %v153 = vpop.xlane.xlu0 %152
    %v154 = vadd.f32 %v114, %v153
    %vm155 = vcmask 1024
    %156 = vst.msk [vmem:[%s3] sm:$0x3] %vm155, %v154
    %v157 = vld [vmem:[%s4] sm:$0x3]
    %160 = vst [vmem:[#allocation1] ss:$4 sm:$0xff] %v106
    %s161 = scalar_lea.vmem [#allocation1], 32
    %162 = vst [vmem:[%s161] ss:$4 sm:$0xff] %v107
    %v163 = vld.sshfl [vmem:[#allocation1] sm:$0xff pattern:$0x73625140]
    %v164 = vld.sshfl [vmem:[#allocation1 + $0x8] sm:$0xff pattern:$0x73625140]
    %v165 = vld.sshfl [vmem:[#allocation1 + $0x10] sm:$0xff pattern:$0x73625140]
    %v166 = vld.sshfl [vmem:[#allocation1 + $0x18] sm:$0xff pattern:$0x73625140]
    %v167 = vld.sshfl [vmem:[#allocation1 + $0x20] sm:$0xff pattern:$0x73625140]
    %v168 = vld.sshfl [vmem:[#allocation1 + $0x28] sm:$0xff pattern:$0x73625140]
    %v169 = vld.sshfl [vmem:[#allocation1 + $0x30] sm:$0xff pattern:$0x73625140]
    %v170 = vld.sshfl [vmem:[#allocation1 + $0x38] sm:$0xff pattern:$0x73625140]
    %v179 = vsel %vm136, %v163, 0.0
    %v180 = vsel %vm136, %v164, 0.0
    %v181 = vadd.f32 %v179, %v180
    %v182 = vsel %vm136, %v165, 0.0
    %v183 = vadd.f32 %v181, %v182
    %v184 = vsel %vm136, %v166, 0.0
    %v185 = vadd.f32 %v183, %v184
    %v186 = vsel %vm136, %v167, 0.0
    %v187 = vadd.f32 %v185, %v186
    %v188 = vsel %vm136, %v168, 0.0
    %v189 = vadd.f32 %v187, %v188
    %v190 = vsel %vm136, %v169, 0.0
    %v191 = vadd.f32 %v189, %v190
    %v192 = vsel %vm136, %v170, 0.0
    %v193 = vadd.f32 %v191, %v192
    %194 = vadd.xlane.f32.xlu0 %v193
    %v195 = vpop.xlane.xlu0 %194
    %v196 = vadd.f32 %v157, %v195
    %197 = vst.msk [vmem:[%s4] sm:$0x3] %vm155, %v196
    // Predicated region
    $region30: #{tpu_custom_call.1} parent=1 // pred_check
      _
    $region31: #{tpu_custom_call.1} parent=1 // pred_check_branch
      %199 = sbr.rel (0) target = $region33
    $region32: #{tpu_custom_call.1} parent=1 // pred_region
      _
    $region33: #{tpu_custom_call.1} parent=1 // pred_fallthru
      _
    // Predicated region
    $region34: #{tpu_custom_call.1} parent=1 // pred_check
      _
    $region35: #{tpu_custom_call.1} parent=1 // pred_check_branch
      %201 = sbr.rel (0) target = $region37
    $region36: #{tpu_custom_call.1} parent=1 // pred_region
      _
    $region37: #{tpu_custom_call.1} parent=1 // pred_fallthru
      _
    // Predicated region
    $region38: #{tpu_custom_call.1} parent=1 // pred_check
      _
    $region39: #{tpu_custom_call.1} parent=1 // pred_check_branch
      %203 = sbr.rel (0) target = $region41
    $region40: #{tpu_custom_call.1} parent=1 // pred_region
      _
    $region41: #{tpu_custom_call.1} parent=1 // pred_fallthru
      _
    // Predicated region
    $region42: #{tpu_custom_call.1} parent=1 // pred_check
      _
    $region43: #{tpu_custom_call.1} parent=1 // pred_check_branch
      %205 = sbr.rel (0) target = $region45
    $region44: #{tpu_custom_call.1} parent=1 // pred_region
      _
    $region45: #{tpu_custom_call.1} parent=1 // pred_fallthru
      _
    %206 = vsyncpa [#allocation3], 1
    %207 = vsyncpa [#allocation5], 1

</llo_original>
